<compile_context>
chip_gen: v7x
topology: tpu7x:2x2x1
jax: 0.10.0
libtpu: 0.0.40
codegen_flags: <defaults>
</compile_context>

<pallas_src>
import functools

import jax
import jax.numpy as jnp
from jax.experimental import pallas as pl
from jax.experimental.pallas import tpu as pltpu


_TARGET_OUT_BLOCK_BYTES = 8 * 1024 * 1024      # 8 MiB output block
_DATA_BLOCK_BUDGET_BYTES = 24 * 1024 * 1024    # budget for 2*(in+out) blocks
_MAX_FUSED_MATRIX_BYTES = 2 * 1024 * 1024      # byte cap for the fused matrix
_FUSED_MAX_K_BF16 = 256                        # fused contraction cap (bf16)
_FUSED_MAX_K_F32 = 128                         # f32 = multi-pass MXU; keep K small
_ROWS_FOLD_MAX_WO = 256                        # fold H replication into RHS below this
_MIN_GRID_STEPS = 4                            # let v7x shard + pipeline the grid
_VMEM_LIMIT_FLOOR = 32 * 1024 * 1024
_VMEM_LIMIT_CEIL = 64 * 1024 * 1024            # v7x physical VMEM


def _fused_kernel(m_ref, x_ref, o_ref, *, precision):
    # m_ref: (H*W, Ho*Wo) resident 0/1 replication matrix (H and W fused)
    # x_ref: (B, H*W)   block of flattened input planes
    # o_ref: (B, Ho*Wo) block of flattened output planes (lane-dense)
    x = x_ref[...].astype(m_ref.dtype)
    o_ref[...] = jnp.dot(
        x, m_ref[...], preferred_element_type=jnp.float32, precision=precision
    ).astype(o_ref.dtype)


def _rows_kernel(rwt_ref, x_ref, o_ref, *, sh, wo, folded, precision):
    # rwt_ref: (W, sh*Wo) if folded else (W, Wo) resident 0/1 matrix
    # x_ref:   (TR, W)      block of input rows (one row per (n, c, h))
    # o_ref:   (TR, sh*Wo)  block of output rows
    x = x_ref[...].astype(rwt_ref.dtype)
    y = jnp.dot(
        x, rwt_ref[...], preferred_element_type=jnp.float32, precision=precision
    ).astype(o_ref.dtype)
    if folded or sh == 1:
        o_ref[...] = y                      # RHS already carries the H replication
    else:
        # Store the (TR, Wo) result sh times at static lane offsets: no
        # materialized concat, no extra store/load per output element.
        for j in range(sh):
            o_ref[:, j * wo:(j + 1) * wo] = y


def _check_int_scale(s):
    si = int(s)
    if si != s or si < 1:
        # TODO(synk): fractional nearest scaling is not implemented.
        raise NotImplementedError(
            f"only positive integer scale factors are supported (got {s!r})")
    return si


def _round_up(v, m):
    return -(-v // m) * m


def _pick_block_rows(total_rows, in_row_bytes, out_row_bytes, row_mult):
    """Row count per block: large enough to amortize per-step overhead, small
    enough for the VMEM budget and for a multi-step ('parallel') grid."""
    b = max(1, _TARGET_OUT_BLOCK_BYTES // out_row_bytes)
    b = min(b, max(1, _DATA_BLOCK_BUDGET_BYTES // (2 * (in_row_bytes + out_row_bytes))))
    # Guarantee >= _MIN_GRID_STEPS grid steps when the row count allows it.
    b = min(b, _round_up(pl.cdiv(total_rows, _MIN_GRID_STEPS), row_mult))
    b = min(b, total_rows)
    if b < total_rows:
        # Round to the dtype's sublane packing (8 rows f32, 16 rows bf16/f16).
        b = max(row_mult, (b // row_mult) * row_mult)
        b = min(b, total_rows)
    return b


def _compiler_params(block_rows, in_row_bytes, out_row_bytes, resident_bytes):
    # Explicit VMEM budget: double-buffered data blocks + resident matrix
    # (kept double-buffered for lowering portability; it is small after the
    # fused-path gating, and it is accounted for here) + 25% headroom.
    need = 2 * block_rows * (in_row_bytes + out_row_bytes) + 2 * resident_bytes
    limit = int(need * 1.25) + (1 << 20)
    limit = min(max(limit, _VMEM_LIMIT_FLOOR), _VMEM_LIMIT_CEIL)
    return pltpu.CompilerParams(
        dimension_semantics=("parallel",),
        vmem_limit_bytes=limit,
    )


def upsample_nearest(x, scale_factor, mode="nearest",
                     max_fused_matrix_bytes=_MAX_FUSED_MATRIX_BYTES):
    """Equivalent of F.interpolate(x, scale_factor, mode='nearest') for NCHW
    float inputs with positive integer scale factors."""
    if mode != "nearest":
        # TODO(synk): bilinear/bicubic need interpolation-weight matrices.
        raise NotImplementedError("only mode='nearest' is implemented")
    if isinstance(scale_factor, (tuple, list)):
        if len(scale_factor) != 2:
            raise NotImplementedError("expected a scalar or 2-element scale_factor")
        sh, sw = (_check_int_scale(s) for s in scale_factor)
    else:
        sh = sw = _check_int_scale(scale_factor)

    if not jnp.issubdtype(x.dtype, jnp.floating):
        # TODO(synk): integer inputs need a gather-based kernel.
        raise NotImplementedError("only floating-point inputs are supported")

    N, C, H, W = x.shape
    Ho, Wo = H * sh, W * sw
    NC = N * C
    itemsize = jnp.dtype(x.dtype).itemsize

    if sh == 1 and sw == 1:
        return x

    # bf16 stays bf16 on the MXU (exact: 0/1 weights, f32 accumulation);
    # everything else computes in f32 with HIGHEST precision so f32 inputs are
    # reproduced bit-exactly (no bf16 rounding on the MXU passes).
    if x.dtype == jnp.bfloat16:
        compute_dtype, precision, fused_k_cap = (
            jnp.bfloat16, None, _FUSED_MAX_K_BF16)
    else:
        compute_dtype, precision, fused_k_cap = (
            jnp.float32, jax.lax.Precision.HIGHEST, _FUSED_MAX_K_F32)
    cdtype_size = jnp.dtype(compute_dtype).itemsize
    row_mult = 16 if itemsize < 4 else 8

    fused_k = H * W
    fused_matrix_bytes = fused_k * Ho * Wo * cdtype_size

    if fused_k <= fused_k_cap and fused_matrix_bytes <= max_fused_matrix_bytes:
        # ---- fused path: one resident (H*W, Ho*Wo) matrix does H and W ----
        # out[nc, ho*Wo + wo] = x[nc, (ho//sh)*W + (wo//sw)]
        src = ((jnp.arange(Ho) // sh)[:, None] * W
               + (jnp.arange(Wo) // sw)[None, :]).reshape(-1)            # (Ho*Wo,)
        m = (jnp.arange(fused_k)[:, None] == src[None, :]).astype(compute_dtype)

        in_row_bytes = fused_k * itemsize
        out_row_bytes = Ho * Wo * itemsize
        b = _pick_block_rows(NC, in_row_bytes, out_row_bytes, row_mult)
        grid = (pl.cdiv(NC, b),)

        cost = pl.CostEstimate(
            flops=int(2 * NC * fused_k * Ho * Wo),
            transcendentals=0,
            bytes_accessed=int((1 + sh * sw) * NC * H * W * itemsize
                               + fused_matrix_bytes),
        )
        out = pl.pallas_call(
            functools.partial(_fused_kernel, precision=precision),
            out_shape=jax.ShapeDtypeStruct((NC, Ho * Wo), x.dtype),
            grid=grid,
            in_specs=[
                pl.BlockSpec((fused_k, Ho * Wo), lambda i: (0, 0)),   # resident
                pl.BlockSpec((b, fused_k), lambda i: (i, 0)),
            ],
            out_specs=pl.BlockSpec((b, Ho * Wo), lambda i: (i, 0)),
            compiler_params=_compiler_params(b, in_row_bytes, out_row_bytes,
                                             fused_matrix_bytes),
            cost_estimate=cost,
        )(m, x.reshape(NC, fused_k))
        return out.reshape(N, C, Ho, Wo)

    # ---- rows path: per-row W replication; H replication either folded into
    #      the RHS (small Wo) or done with sh static-slice stores ------------
    # TODO(synk): for extremely wide planes (W or sh*Wo approaching VMEM size)
    # an additional W-tiling level would be needed.
    rows = NC * H
    folded = (sh > 1) and (Wo < _ROWS_FOLD_MAX_WO)
    if folded:
        src_w = jnp.tile(jnp.arange(Wo) // sw, sh)        # (sh*Wo,)
    else:
        src_w = jnp.arange(Wo) // sw                      # (Wo,)
    rwt = (jnp.arange(W)[:, None] == src_w[None, :]).astype(compute_dtype)
    rhs_w = rwt.shape[1]
    rwt_bytes = W * rhs_w * cdtype_size

    in_row_bytes = W * itemsize
    out_row_bytes = sh * Wo * itemsize
    tr = _pick_block_rows(rows, in_row_bytes, out_row_bytes, row_mult)
    grid = (pl.cdiv(rows, tr),)

    cost = pl.CostEstimate(
        flops=int(2 * rows * W * rhs_w),
        transcendentals=0,
        bytes_accessed=int((1 + sh * sw) * NC * H * W * itemsize + rwt_bytes),
    )
    out = pl.pallas_call(
        functools.partial(_rows_kernel, sh=sh, wo=Wo, folded=folded,
                          precision=precision),
        out_shape=jax.ShapeDtypeStruct((rows, sh * Wo), x.dtype),
        grid=grid,
        in_specs=[
            pl.BlockSpec((W, rhs_w), lambda i: (0, 0)),               # resident
            pl.BlockSpec((tr, W), lambda i: (i, 0)),
        ],
        out_specs=pl.BlockSpec((tr, sh * Wo), lambda i: (i, 0)),
        compiler_params=_compiler_params(tr, in_row_bytes, out_row_bytes,
                                         rwt_bytes),
        cost_estimate=cost,
    )(rwt, x.reshape(rows, W))
    return out.reshape(N, C, Ho, Wo)


if __name__ == "__main__":
    key = jax.random.PRNGKey(0)
    k1, k2, k3 = jax.random.split(key, 3)

    # 1) Module-spec shape (NCHW f32, scale 2): H*W=256 > 128 -> rows path
    #    with the H replication folded into the RHS (Wo=32 < 256).
    x1 = jax.random.normal(k1, (2, 4, 16, 16), dtype=jnp.float32)
    y1 = jax.block_until_ready(upsample_nearest(x1, scale_factor=2))
    ref1 = jnp.repeat(jnp.repeat(x1, 2, axis=2), 2, axis=3)
    assert y1.shape == (2, 4, 32, 32), y1.shape
    assert y1.dtype == x1.dtype, y1.dtype
    assert jnp.array_equal(y1, ref1), "rows(folded) path mismatch vs reference"

    # 2) bf16 small plane: exercises the fused single-matmul path.
    x2 = jax.random.normal(k2, (2, 4, 8, 8), dtype=jnp.bfloat16)
    y2 = jax.block_until_ready(upsample_nearest(x2, scale_factor=2))
    ref2 = jnp.repeat(jnp.repeat(x2, 2, axis=2), 2, axis=3)
    assert y2.shape == (2, 4, 16, 16), y2.shape
    assert y2.dtype == x2.dtype, y2.dtype
    assert jnp.array_equal(y2, ref2), "fused path mismatch vs reference"

    # 3) Wide rows + asymmetric scale: rows path with sh static-slice stores
    #    (Wo=256 >= fold threshold; lane offsets 128-aligned).
    x3 = jax.random.normal(k3, (1, 3, 8, 128), dtype=jnp.float32)
    y3 = jax.block_until_ready(upsample_nearest(x3, scale_factor=(3, 2)))
    ref3 = jnp.repeat(jnp.repeat(x3, 3, axis=2), 2, axis=3)
    assert y3.shape == (1, 3, 24, 256), y3.shape
    assert y3.dtype == x3.dtype, y3.dtype
    assert jnp.array_equal(y3, ref3), "rows(slice-store) path mismatch vs reference"

    print("KERNEL_OK")
</pallas_src>

<mosaic_0001>
module attributes {stable_mosaic.version = 11 : i64} {
  func.func @_rows_kernel(%arg0: i32, %arg1: memref<16x64xf32, #tpu.memory_space<vmem>>, %arg2: memref<32x16xf32, #tpu.memory_space<vmem>>, %arg3: memref<32x64xf32, #tpu.memory_space<vmem>>) attributes {dimension_semantics = [#tpu.dimension_semantics<parallel>], iteration_bounds = array<i64: 4>, scalar_prefetch = 0 : i64, scratch_operands = 0 : i64, tpu.core_type = #tpu.core_type<tc>, window_params = [{pipeline_mode = #tpu.pipeline_mode<synchronous>, transform_indices = @transform_0, window_bounds = array<i64: 16, 64>}, {transform_indices = @transform_1, window_bounds = array<i64: 32, 16>}, {transform_indices = @transform_2, window_bounds = array<i64: 32, 64>}]} {
    %c0 = arith.constant 0 : index
    %c0_0 = arith.constant 0 : index
    %0 = vector.load %arg2[%c0, %c0_0] : memref<32x16xf32, #tpu.memory_space<vmem>>, vector<32x16xf32>
    %c0_1 = arith.constant 0 : index
    %c0_2 = arith.constant 0 : index
    %1 = vector.load %arg1[%c0_1, %c0_2] : memref<16x64xf32, #tpu.memory_space<vmem>>, vector<16x64xf32>
    %cst = arith.constant dense<0.000000e+00> : vector<32x64xf32>
    %2 = tpu.matmul %0, %1, %cst {dimension_numbers = #tpu.dot_dimension_numbers<[1], [0], [0], [1], [0, 0, 1, 1], [], []>, precision = #tpu.contract_precision<fp32>} : vector<32x16xf32>, vector<16x64xf32>, vector<32x64xf32> -> vector<32x64xf32>
    %c0_3 = arith.constant 0 : index
    %c0_4 = arith.constant 0 : index
    %3 = vector.load %arg3[%c0_3, %c0_4] : memref<32x64xf32, #tpu.memory_space<vmem>>, vector<32x64xf32>
    tpu.vector_store %arg3[%c0_3, %c0_4], %2 {strides = array<i32>} : memref<32x64xf32, #tpu.memory_space<vmem>>, vector<32x64xf32>,
    return
  }
  func.func @transform_0(%arg0: i32) -> (i32, i32) {
    %c0_i32 = arith.constant 0 : i32
    %c0_i32_0 = arith.constant 0 : i32
    %c0_i32_1 = arith.constant 0 : i32
    return %c0_i32, %c0_i32_0 : i32, i32
  }
  func.func @transform_1(%arg0: i32) -> (i32, i32) {
    %c0_i32 = arith.constant 0 : i32
    %c0_i32_0 = arith.constant 0 : i32
    return %arg0, %c0_i32 : i32, i32
  }
  func.func @transform_2(%arg0: i32) -> (i32, i32) {
    %c0_i32 = arith.constant 0 : i32
    %c0_i32_0 = arith.constant 0 : i32
    return %arg0, %c0_i32 : i32, i32
  }
}

</mosaic_0001>

<llo_original>
// kernel: tpu_custom_call.1
$region0: #{tpu_custom_call.1}
  #allocation0 [shape = 'u32[]', space=smem, size = 0x4, offset = 0x4, fixed_abs, tag = 'smem constant byte address 0x4 - core index']
  #allocation1 [shape = 'u32[144,128]{1,0:T(1,128)}', space=vmem, size = 0x12000, scoped, tag = 'internal scratch']
  %s0 = inlined_call_operand.vmem [shape: f32[16,64], index: 0, kind: input, shape index: {}]
  %s1 = inlined_call_operand.vmem [shape: f32[128,16], index: 1, kind: input, shape index: {}]
  %s2 = inlined_call_operand.vmem [shape: f32[128,64], index: 2, kind: output, shape index: {}]
  %s3 = sld [smem:[#allocation0]]
  $region41: #{tpu_custom_call.1} parent=0
    _
  %s5 = ssub.s32 1, %s3
  %s6 = scalar_select 0, %s5, %s3
  loop: start=0, step=1, limit=6
  $region2: #{tpu_custom_call.1} parent=0 // loop_pre_header
    _
  $region3: #{tpu_custom_call.1} parent=0 // loop_header
    %s8 = sphi 0, %s12
    %p9 = scmp.ge.s32.totalorder %s8, 6
    %s16 = sphi 0, %s16
    %s18 = sphi 0, %s16
    %s19 = sphi 0, %s18
    %s33 = sphi 0, %s19
    %s39 = sphi 0, %s41
    %s42 = sphi 0, %s39
    %s43 = sphi 0, %s42
    %s59 = sphi 0, %s43
    %s65 = sphi 0, %s67
    %s68 = sphi 0, %s65
    %s69 = sphi 0, %s68
    %s85 = sphi 0, %s69
  $region4: #{tpu_custom_call.1} parent=0 // loop_header_branch
    %11 = sbr.rel (%p9) target = $region8
  $region5: #{tpu_custom_call.1} parent=0 // loop_body
    %s13 = ssub.s32 %s8, 1
    %s14 = ssub.s32 %s8, 2
    %s15 = sadd.s32 %s8, 1
    %s17 = sadd.s32 %s16, 1
    %p20 = scmp.eq.s32.totalorder %s8, 3
    %p21 = scmp.ne.s32.totalorder %s16, %s18
    %p22 = scmp.eq.s32.totalorder %s8, 0
    %p23 = por %p21, %p22
    %p24 = scmp.ne.s32.totalorder %s16, %s18
    %p25 = scmp.eq.s32.totalorder %s13, 3
    %p26 = por %p24, %p25
    %p27 = scmp.ne.s32.totalorder %s18, %s19
    %p28 = scmp.eq.s32.totalorder %s13, 0
    %p29 = por %p27, %p28
    %p30 = scmp.ne.s32.totalorder %s18, %s19
    %p31 = scmp.eq.s32.totalorder %s14, 3
    %p32 = por %p30, %p31
    %p34 = scmp.ne.s32.totalorder %s19, %s33
    %p35 = scmp.eq.s32.totalorder %s14, 0
    %p36 = por %p34, %p35
    %s37 = ssub.s32 %s8, %s15
    %p38 = scmp.eq.s32.totalorder %s37, 0
    %s40 = sadd.s32 %s39, 1
    %s41 = scalar_select %p38, %s39, %s40
    %p44 = pneg %p38
    %p45 = scmp.eq.s32.totalorder %s8, 3
    %p46 = por %p44, %p45
    %p47 = scmp.ne.s32.totalorder %s39, %s42
    %p48 = scmp.eq.s32.totalorder %s8, 0
    %p49 = por %p47, %p48
    %p50 = scmp.ne.s32.totalorder %s39, %s42
    %p51 = scmp.eq.s32.totalorder %s13, 3
    %p52 = por %p50, %p51
    %p53 = scmp.ne.s32.totalorder %s42, %s43
    %p54 = scmp.eq.s32.totalorder %s13, 0
    %p55 = por %p53, %p54
    %p56 = scmp.ne.s32.totalorder %s42, %s43
    %p57 = scmp.eq.s32.totalorder %s14, 3
    %p58 = por %p56, %p57
    %p60 = scmp.ne.s32.totalorder %s43, %s59
    %p61 = scmp.eq.s32.totalorder %s14, 0
    %p62 = por %p60, %p61
    %s63 = ssub.s32 %s8, %s15
    %p64 = scmp.eq.s32.totalorder %s63, 0
    %s66 = sadd.s32 %s65, 1
    %s67 = scalar_select %p64, %s65, %s66
    %p70 = pneg %p64
    %p71 = scmp.eq.s32.totalorder %s8, 3
    %p72 = por %p70, %p71
    %p73 = scmp.ne.s32.totalorder %s65, %s68
    %p74 = scmp.eq.s32.totalorder %s8, 0
    %p75 = por %p73, %p74
    %p76 = scmp.ne.s32.totalorder %s65, %s68
    %p77 = scmp.eq.s32.totalorder %s13, 3
    %p78 = por %p76, %p77
    %p79 = scmp.ne.s32.totalorder %s68, %s69
    %p80 = scmp.eq.s32.totalorder %s13, 0
    %p81 = por %p79, %p80
    %p82 = scmp.ne.s32.totalorder %s68, %s69
    %p83 = scmp.eq.s32.totalorder %s14, 3
    %p84 = por %p82, %p83
    %p86 = scmp.ne.s32.totalorder %s69, %s85
    %p87 = scmp.eq.s32.totalorder %s14, 0
    %p88 = por %p86, %p87
    %p89 = scmp.le.s32.totalorder 1, %s8
    %p90 = scmp.lt.s32.totalorder %s8, 5
    %p91 = pnand %p89, %p90
    %p92 = pneg %p91
    // Predicated region
    $region9: #{tpu_custom_call.1} parent=5 // pred_check
      _
    $region10: #{tpu_custom_call.1} parent=5 // pred_check_branch
      %94 = sbr.rel (%p91) target = $region12
    $region11: #{tpu_custom_call.1} parent=5 // pred_region
      %s95 = ssub.s32 %s8, 1
      // Predicated region
      $region13: #{tpu_custom_call.1} parent=11 // pred_check
        %p96 = pneg %p29
      $region14: #{tpu_custom_call.1} parent=11 // pred_check_branch
        %98 = sbr.rel (%p96) target = $region16
      $region15: #{tpu_custom_call.1} parent=11 // pred_region
        _
      $region16: #{tpu_custom_call.1} parent=11 // pred_fallthru
        _
    $region12: #{tpu_custom_call.1} parent=5 // pred_fallthru
      _
    %p99 = scmp.lt.s32.totalorder %s8, 4
    // Predicated region
    $region17: #{tpu_custom_call.1} parent=5 // pred_check
      %p100 = pneg %p99
    $region18: #{tpu_custom_call.1} parent=5 // pred_check_branch
      %102 = sbr.rel (%p100) target = $region20
    $region19: #{tpu_custom_call.1} parent=5 // pred_region
      // Predicated region
      $region21: #{tpu_custom_call.1} parent=19 // pred_check
        %p103 = pneg %p49
      $region22: #{tpu_custom_call.1} parent=19 // pred_check_branch
        %105 = sbr.rel (%p103) target = $region24
      $region23: #{tpu_custom_call.1} parent=19 // pred_region
        %s106 = smul.u32 4, %s8
        %p107 = scmp.lt.s32.totalorder %s106, 15
        %s108 = scalar_select %p107, %s106, 15
        %s109 = smul.addr %s108, 8
        %s110 = scalar_lea.vmem %s1, %s109
        %s111 = smul.u32 4, %s8
      $region24: #{tpu_custom_call.1} parent=19 // pred_fallthru
        _
    $region20: #{tpu_custom_call.1} parent=5 // pred_fallthru
      _
    %p112 = scmp.le.s32.totalorder 1, %s8
    %p113 = scmp.lt.s32.totalorder %s8, 5
    %p114 = pnand %p112, %p113
    %p115 = pneg %p114
    // Predicated region
    $region25: #{tpu_custom_call.1} parent=5 // pred_check
      _
    $region26: #{tpu_custom_call.1} parent=5 // pred_check_branch
      %117 = sbr.rel (%p114) target = $region28
    $region27: #{tpu_custom_call.1} parent=5 // pred_region
      %s118 = ssub.s32 %s8, 1
      %p119 = pneg %p29
      %p120 = pneg %p26
      %s121 = smul.u32 4, %s13
      %p122 = scmp.lt.s32.totalorder %s121, 15
      %s123 = scalar_select %p122, %s121, 15
      %s124 = smul.addr %s123, 8
      %s125 = scalar_lea.vmem %s1, %s124
      %p126 = pneg %p55
      %p127 = pneg %p52
      %p128 = pneg %p81
      %p129 = pneg %p78
      %s130 = smul.u32 4, %s13
      %p131 = scmp.lt.s32.totalorder %s130, 15
      %s132 = scalar_select %p131, %s130, 15
      %s133 = smul.addr %s132, 8
      %s134 = scalar_lea.vmem %s2, %s133
      %s135 = smul.u32 4, %s13
      %p136 = scmp.lt.s32.totalorder %s135, 15
      %s137 = scalar_select %p136, %s135, 15
      %s138 = smul.addr %s137, 8
      %s139 = scalar_lea.vmem %s1, %s138
      %s140 = smul.u32 4, %s13
      %s141 = smul.u32 4, %s13
      %p142 = scmp.lt.s32.totalorder %s141, 15
      %s143 = scalar_select %p142, %s141, 15
      %s144 = smul.addr %s143, 8
      %s145 = scalar_lea.vmem %s2, %s144
      %s146 = smul.u32 4, %s13
      %v147 = vld [vmem:[%s139] sm:$0xff]
      %v148 = vld [vmem:[%s139 + $0x8] sm:$0xff]
      %v149 = vld [vmem:[%s139 + $0x10] sm:$0xff]
      %v150 = vld [vmem:[%s139 + $0x18] sm:$0xff]
      %v151 = vld [vmem:[%s0] sm:$0xff]
      %v152 = vld [vmem:[%s0 + $0x8] sm:$0xff]
      %vm153 = vcmask 130048
      %v155 = vsel %vm153, %v147, 0
      %v158 = vsel %vm153, %v148, 0
      %v161 = vsel %vm153, %v149, 0
      %v164 = vsel %vm153, %v150, 0
      %166 = vmatprep.subr.mxu0 0.0
      %v167 = vand.u32 %v151, 4294901760
      %168 = vmatpush1.msra.mxu0 %v167
      %169 = vmatprep.subr.mxu0 0.0
      %v170 = vand.u32 %v152, 4294901760
      %171 = vmatpush1.msra.mxu0 %v170
      %172 = vmatprep.subr.mxu0 0.0
      %173 = vmatpush1.msra.mxu0 0.0
      %174 = vmatprep.subr.mxu0 0.0
      %175 = vmatpush1.msra.mxu0 0.0
      %176 = vmatprep.subr.mxu0 0.0
      %177 = vmatpush1.msra.mxu0 0.0
      %178 = vmatprep.subr.mxu0 0.0
      %179 = vmatpush1.msra.mxu0 0.0
      %180 = vmatprep.subr.mxu0 0.0
      %181 = vmatpush1.msra.mxu0 0.0
      %182 = vmatprep.subr.mxu0 0.0
      %183 = vmatpush1.msra.mxu0 0.0
      %184 = vmatprep.subr.mxu0 0.0
      %185 = vmatpush1.msra.mxu0 0.0
      %186 = vmatprep.subr.mxu0 0.0
      %187 = vmatpush1.msra.mxu0 0.0
      %188 = vmatprep.subr.mxu0 0.0
      %189 = vmatpush1.msra.mxu0 0.0
      %190 = vmatprep.subr.mxu0 0.0
      %191 = vmatpush1.msra.mxu0 0.0
      %192 = vmatprep.subr.mxu0 0.0
      %193 = vmatpush1.msra.mxu0 0.0
      %194 = vmatprep.subr.mxu0 0.0
      %195 = vmatpush1.msra.mxu0 0.0
      %196 = vmatprep.subr.mxu0 0.0
      %197 = vmatpush1.msra.mxu0 0.0
      %198 = vmatprep.subr.mxu0 0.0
      %199 = vmatpush1.msra.mxu0 0.0
      %200 = vmatprep.subr.mxu0 0.0
      %201 = vmatpush1.msra.mxu0 0.0
      %202 = vmatprep.subr.mxu0 0.0
      %203 = vmatpush1.msra.mxu0 0.0
      %204 = vmatprep.subr.mxu0 0.0
      %205 = vmatpush1.msra.mxu0 0.0
      %206 = vmatprep.subr.mxu0 0.0
      %207 = vmatpush1.msra.mxu0 0.0
      %208 = vmatprep.subr.mxu0 0.0
      %209 = vmatpush1.msra.mxu0 0.0
      %210 = vmatprep.subr.mxu0 0.0
      %211 = vmatpush1.msra.mxu0 0.0
      %212 = vmatprep.subr.mxu0 0.0
      %213 = vmatpush1.msra.mxu0 0.0
      %214 = vmatprep.subr.mxu0 0.0
      %215 = vmatpush1.msra.mxu0 0.0
      %216 = vmatprep.subr.mxu0 0.0
      %217 = vmatpush1.msra.mxu0 0.0
      %218 = vmatprep.subr.mxu0 0.0
      %219 = vmatpush1.msra.mxu0 0.0
      %220 = vmatprep.subr.mxu0 0.0
      %221 = vmatpush1.msra.mxu0 0.0
      %222 = vmatprep.subr.mxu0 0.0
      %223 = vmatpush1.msra.mxu0 0.0
      %224 = vmatprep.subr.mxu0 0.0
      %225 = vmatpush1.msra.mxu0 0.0
      %226 = vmatprep.subr.mxu0 0.0
      %227 = vmatpush1.msra.mxu0 0.0
      %228 = vmatprep.subr.mxu0 0.0
      %229 = vmatpush1.msra.mxu0 0.0
      %230 = vmatprep.subr.mxu0 0.0
      %231 = vmatpush1.msra.mxu0 0.0
      %232 = vmatprep.mubr.f32.mxu0 0.0
      %v233 = vand.u32 %v155, 4294901760
      %v234 = vsub.f32 %v155, %v233
      %v235 = vand.u32 %v234, 4294901760
      %v236 = vsub.f32 %v234, %v235
      %v237 = vand.u32 %v236, 4294901760
      %238 = vmatmul.mubr.f32.gmra.mrb[0].mxu0 %v237
      %v239 = vpop.f32.mrb[0].mxu0
      %v240 = vadd.f32 0.0, %v239
      %v241 = vpop.f32.mrb[0].mxu0
      %242 = vmatprep.mubr.f32.mxu0 0.0
      %v243 = vand.u32 %v158, 4294901760
      %v244 = vsub.f32 %v158, %v243
      %v245 = vand.u32 %v244, 4294901760
      %v246 = vsub.f32 %v244, %v245
      %v247 = vand.u32 %v246, 4294901760
      %248 = vmatmul.mubr.f32.gmra.mrb[0].mxu0 %v247
      %v249 = vpop.f32.mrb[0].mxu0
      %v250 = vadd.f32 0.0, %v249
      %v251 = vpop.f32.mrb[0].mxu0
      %252 = vmatprep.mubr.f32.mxu0 0.0
      %v253 = vand.u32 %v161, 4294901760
      %v254 = vsub.f32 %v161, %v253
      %v255 = vand.u32 %v254, 4294901760
      %v256 = vsub.f32 %v254, %v255
      %v257 = vand.u32 %v256, 4294901760
      %258 = vmatmul.mubr.f32.gmra.mrb[0].mxu0 %v257
      %v259 = vpop.f32.mrb[0].mxu0
      %v260 = vadd.f32 0.0, %v259
      %v261 = vpop.f32.mrb[0].mxu0
      %262 = vmatprep.mubr.f32.mxu0 0.0
      %v263 = vand.u32 %v164, 4294901760
      %v264 = vsub.f32 %v164, %v263
      %v265 = vand.u32 %v264, 4294901760
      %v266 = vsub.f32 %v264, %v265
      %v267 = vand.u32 %v266, 4294901760
      %268 = vmatmul.mubr.f32.gmra.mrb[0].mxu0 %v267
      %v269 = vpop.f32.mrb[0].mxu0
      %v270 = vadd.f32 0.0, %v269
      %v271 = vpop.f32.mrb[0].mxu0
      %272 = vdwg.mxu0
      %273 = vmatprep.subr.mxu0 0.0
      %v274 = vand.u32 %v151, 4294901760
      %v275 = vsub.f32 %v151, %v274
      %v276 = vand.u32 %v275, 4294901760
      %v277 = vsub.f32 %v275, %v276
      %v278 = vand.u32 %v277, 4294901760
      %279 = vmatpush1.msra.mxu0 %v278
      %280 = vmatprep.subr.mxu0 0.0
      %v281 = vand.u32 %v152, 4294901760
      %v282 = vsub.f32 %v152, %v281
      %v283 = vand.u32 %v282, 4294901760
      %v284 = vsub.f32 %v282, %v283
      %v285 = vand.u32 %v284, 4294901760
      %286 = vmatpush1.msra.mxu0 %v285
      %287 = vmatprep.subr.mxu0 0.0
      %288 = vmatpush1.msra.mxu0 0.0
      %289 = vmatprep.subr.mxu0 0.0
      %290 = vmatpush1.msra.mxu0 0.0
      %291 = vmatprep.subr.mxu0 0.0
      %292 = vmatpush1.msra.mxu0 0.0
      %293 = vmatprep.subr.mxu0 0.0
      %294 = vmatpush1.msra.mxu0 0.0
      %295 = vmatprep.subr.mxu0 0.0
      %296 = vmatpush1.msra.mxu0 0.0
      %297 = vmatprep.subr.mxu0 0.0
      %298 = vmatpush1.msra.mxu0 0.0
      %299 = vmatprep.subr.mxu0 0.0
      %300 = vmatpush1.msra.mxu0 0.0
      %301 = vmatprep.subr.mxu0 0.0
      %302 = vmatpush1.msra.mxu0 0.0
      %303 = vmatprep.subr.mxu0 0.0
      %304 = vmatpush1.msra.mxu0 0.0
      %305 = vmatprep.subr.mxu0 0.0
      %306 = vmatpush1.msra.mxu0 0.0
      %307 = vmatprep.subr.mxu0 0.0
      %308 = vmatpush1.msra.mxu0 0.0
      %309 = vmatprep.subr.mxu0 0.0
      %310 = vmatpush1.msra.mxu0 0.0
      %311 = vmatprep.subr.mxu0 0.0
      %312 = vmatpush1.msra.mxu0 0.0
      %313 = vmatprep.subr.mxu0 0.0
      %314 = vmatpush1.msra.mxu0 0.0
      %315 = vmatprep.subr.mxu0 0.0
      %316 = vmatpush1.msra.mxu0 0.0
      %317 = vmatprep.subr.mxu0 0.0
      %318 = vmatpush1.msra.mxu0 0.0
      %319 = vmatprep.subr.mxu0 0.0
      %320 = vmatpush1.msra.mxu0 0.0
      %321 = vmatprep.subr.mxu0 0.0
      %322 = vmatpush1.msra.mxu0 0.0
      %323 = vmatprep.subr.mxu0 0.0
      %324 = vmatpush1.msra.mxu0 0.0
      %325 = vmatprep.subr.mxu0 0.0
      %326 = vmatpush1.msra.mxu0 0.0
      %327 = vmatprep.subr.mxu0 0.0
      %328 = vmatpush1.msra.mxu0 0.0
      %329 = vmatprep.subr.mxu0 0.0
      %330 = vmatpush1.msra.mxu0 0.0
      %331 = vmatprep.subr.mxu0 0.0
      %332 = vmatpush1.msra.mxu0 0.0
      %333 = vmatprep.subr.mxu0 0.0
      %334 = vmatpush1.msra.mxu0 0.0
      %335 = vmatprep.subr.mxu0 0.0
      %336 = vmatpush1.msra.mxu0 0.0
      %337 = vmatprep.subr.mxu0 0.0
      %338 = vmatpush1.msra.mxu0 0.0
      %339 = vmatprep.subr.mxu0 0.0
      %340 = vmatpush1.msra.mxu0 0.0
      %341 = vmatprep.subr.mxu0 0.0
      %342 = vmatpush1.msra.mxu0 0.0
      %343 = vmatprep.subr.mxu0 0.0
      %344 = vmatpush1.msra.mxu0 0.0
      %345 = vmatprep.subr.mxu0 0.0
      %346 = vmatpush1.msra.mxu0 0.0
      %347 = vmatprep.mubr.f32.mxu0 0.0
      %v348 = vand.u32 %v155, 4294901760
      %349 = vmatmul.mubr.f32.gmra.mrb[0].mxu0 %v348
      %v350 = vpop.f32.mrb[0].mxu0
      %v351 = vadd.f32 %v240, %v350
      %v352 = vpop.f32.mrb[0].mxu0
      %353 = vmatprep.mubr.f32.mxu0 0.0
      %v354 = vand.u32 %v158, 4294901760
      %355 = vmatmul.mubr.f32.gmra.mrb[0].mxu0 %v354
      %v356 = vpop.f32.mrb[0].mxu0
      %v357 = vadd.f32 %v250, %v356
      %v358 = vpop.f32.mrb[0].mxu0
      %359 = vmatprep.mubr.f32.mxu0 0.0
      %v360 = vand.u32 %v161, 4294901760
      %361 = vmatmul.mubr.f32.gmra.mrb[0].mxu0 %v360
      %v362 = vpop.f32.mrb[0].mxu0
      %v363 = vadd.f32 %v260, %v362
      %v364 = vpop.f32.mrb[0].mxu0
      %365 = vmatprep.mubr.f32.mxu0 0.0
      %v366 = vand.u32 %v164, 4294901760
      %367 = vmatmul.mubr.f32.gmra.mrb[0].mxu0 %v366
      %v368 = vpop.f32.mrb[0].mxu0
      %v369 = vadd.f32 %v270, %v368
      %v370 = vpop.f32.mrb[0].mxu0
      %371 = vdwg.mxu0
      %372 = vmatprep.subr.mxu0 0.0
      %v373 = vand.u32 %v151, 4294901760
      %v374 = vsub.f32 %v151, %v373
      %375 = vmatpush1.msra.mxu0 %v374
      %376 = vmatprep.subr.mxu0 0.0
      %v377 = vand.u32 %v152, 4294901760
      %v378 = vsub.f32 %v152, %v377
      %379 = vmatpush1.msra.mxu0 %v378
      %380 = vmatprep.subr.mxu0 0.0
      %381 = vmatpush1.msra.mxu0 0.0
      %382 = vmatprep.subr.mxu0 0.0
      %383 = vmatpush1.msra.mxu0 0.0
      %384 = vmatprep.subr.mxu0 0.0
      %385 = vmatpush1.msra.mxu0 0.0
      %386 = vmatprep.subr.mxu0 0.0
      %387 = vmatpush1.msra.mxu0 0.0
      %388 = vmatprep.subr.mxu0 0.0
      %389 = vmatpush1.msra.mxu0 0.0
      %390 = vmatprep.subr.mxu0 0.0
      %391 = vmatpush1.msra.mxu0 0.0
      %392 = vmatprep.subr.mxu0 0.0
      %393 = vmatpush1.msra.mxu0 0.0
      %394 = vmatprep.subr.mxu0 0.0
      %395 = vmatpush1.msra.mxu0 0.0
      %396 = vmatprep.subr.mxu0 0.0
      %397 = vmatpush1.msra.mxu0 0.0
      %398 = vmatprep.subr.mxu0 0.0
      %399 = vmatpush1.msra.mxu0 0.0
      %400 = vmatprep.subr.mxu0 0.0
      %401 = vmatpush1.msra.mxu0 0.0
      %402 = vmatprep.subr.mxu0 0.0
      %403 = vmatpush1.msra.mxu0 0.0
      %404 = vmatprep.subr.mxu0 0.0
      %405 = vmatpush1.msra.mxu0 0.0
      %406 = vmatprep.subr.mxu0 0.0
      %407 = vmatpush1.msra.mxu0 0.0
      %408 = vmatprep.subr.mxu0 0.0
      %409 = vmatpush1.msra.mxu0 0.0
      %410 = vmatprep.subr.mxu0 0.0
      %411 = vmatpush1.msra.mxu0 0.0
      %412 = vmatprep.subr.mxu0 0.0
      %413 = vmatpush1.msra.mxu0 0.0
      %414 = vmatprep.subr.mxu0 0.0
      %415 = vmatpush1.msra.mxu0 0.0
      %416 = vmatprep.subr.mxu0 0.0
      %417 = vmatpush1.msra.mxu0 0.0
      %418 = vmatprep.subr.mxu0 0.0
      %419 = vmatpush1.msra.mxu0 0.0
      %420 = vmatprep.subr.mxu0 0.0
      %421 = vmatpush1.msra.mxu0 0.0
      %422 = vmatprep.subr.mxu0 0.0
      %423 = vmatpush1.msra.mxu0 0.0
      %424 = vmatprep.subr.mxu0 0.0
      %425 = vmatpush1.msra.mxu0 0.0
      %426 = vmatprep.subr.mxu0 0.0
      %427 = vmatpush1.msra.mxu0 0.0
      %428 = vmatprep.subr.mxu0 0.0
      %429 = vmatpush1.msra.mxu0 0.0
      %430 = vmatprep.subr.mxu0 0.0
      %431 = vmatpush1.msra.mxu0 0.0
      %432 = vmatprep.subr.mxu0 0.0
      %433 = vmatpush1.msra.mxu0 0.0
      %434 = vmatprep.subr.mxu0 0.0
      %435 = vmatpush1.msra.mxu0 0.0
      %436 = vmatprep.subr.mxu0 0.0
      %437 = vmatpush1.msra.mxu0 0.0
      %438 = vmatprep.subr.mxu0 0.0
      %439 = vmatpush1.msra.mxu0 0.0
      %440 = vmatprep.mubr.f32.mxu0 0.0
      %v441 = vand.u32 %v155, 4294901760
      %v442 = vsub.f32 %v155, %v441
      %443 = vmatmul.mubr.f32.gmra.mrb[0].mxu0 %v442
      %v444 = vpop.f32.mrb[0].mxu0
      %v445 = vadd.f32 %v351, %v444
      %v446 = vpop.f32.mrb[0].mxu0
      %447 = vmatprep.mubr.f32.mxu0 0.0
      %v448 = vand.u32 %v158, 4294901760
      %v449 = vsub.f32 %v158, %v448
      %450 = vmatmul.mubr.f32.gmra.mrb[0].mxu0 %v449
      %v451 = vpop.f32.mrb[0].mxu0
      %v452 = vadd.f32 %v357, %v451
      %v453 = vpop.f32.mrb[0].mxu0
      %454 = vmatprep.mubr.f32.mxu0 0.0
      %v455 = vand.u32 %v161, 4294901760
      %v456 = vsub.f32 %v161, %v455
      %457 = vmatmul.mubr.f32.gmra.mrb[0].mxu0 %v456
      %v458 = vpop.f32.mrb[0].mxu0
      %v459 = vadd.f32 %v363, %v458
      %v460 = vpop.f32.mrb[0].mxu0
      %461 = vmatprep.mubr.f32.mxu0 0.0
      %v462 = vand.u32 %v164, 4294901760
      %v463 = vsub.f32 %v164, %v462
      %464 = vmatmul.mubr.f32.gmra.mrb[0].mxu0 %v463
      %v465 = vpop.f32.mrb[0].mxu0
      %v466 = vadd.f32 %v369, %v465
      %v467 = vpop.f32.mrb[0].mxu0
      %468 = vdwg.mxu0
      %469 = vmatprep.subr.mxu0 0.0
      %v470 = vand.u32 %v151, 4294901760
      %471 = vmatpush1.msra.mxu0 %v470
      %472 = vmatprep.subr.mxu0 0.0
      %v473 = vand.u32 %v152, 4294901760
      %474 = vmatpush1.msra.mxu0 %v473
      %475 = vmatprep.subr.mxu0 0.0
      %476 = vmatpush1.msra.mxu0 0.0
      %477 = vmatprep.subr.mxu0 0.0
      %478 = vmatpush1.msra.mxu0 0.0
      %479 = vmatprep.subr.mxu0 0.0
      %480 = vmatpush1.msra.mxu0 0.0
      %481 = vmatprep.subr.mxu0 0.0
      %482 = vmatpush1.msra.mxu0 0.0
      %483 = vmatprep.subr.mxu0 0.0
      %484 = vmatpush1.msra.mxu0 0.0
      %485 = vmatprep.subr.mxu0 0.0
      %486 = vmatpush1.msra.mxu0 0.0
      %487 = vmatprep.subr.mxu0 0.0
      %488 = vmatpush1.msra.mxu0 0.0
      %489 = vmatprep.subr.mxu0 0.0
      %490 = vmatpush1.msra.mxu0 0.0
      %491 = vmatprep.subr.mxu0 0.0
      %492 = vmatpush1.msra.mxu0 0.0
      %493 = vmatprep.subr.mxu0 0.0
      %494 = vmatpush1.msra.mxu0 0.0
      %495 = vmatprep.subr.mxu0 0.0
      %496 = vmatpush1.msra.mxu0 0.0
      %497 = vmatprep.subr.mxu0 0.0
      %498 = vmatpush1.msra.mxu0 0.0
      %499 = vmatprep.subr.mxu0 0.0
      %500 = vmatpush1.msra.mxu0 0.0
      %501 = vmatprep.subr.mxu0 0.0
      %502 = vmatpush1.msra.mxu0 0.0
      %503 = vmatprep.subr.mxu0 0.0
      %504 = vmatpush1.msra.mxu0 0.0
      %505 = vmatprep.subr.mxu0 0.0
      %506 = vmatpush1.msra.mxu0 0.0
      %507 = vmatprep.subr.mxu0 0.0
      %508 = vmatpush1.msra.mxu0 0.0
      %509 = vmatprep.subr.mxu0 0.0
      %510 = vmatpush1.msra.mxu0 0.0
      %511 = vmatprep.subr.mxu0 0.0
      %512 = vmatpush1.msra.mxu0 0.0
      %513 = vmatprep.subr.mxu0 0.0
      %514 = vmatpush1.msra.mxu0 0.0
      %515 = vmatprep.subr.mxu0 0.0
      %516 = vmatpush1.msra.mxu0 0.0
      %517 = vmatprep.subr.mxu0 0.0
      %518 = vmatpush1.msra.mxu0 0.0
      %519 = vmatprep.subr.mxu0 0.0
      %520 = vmatpush1.msra.mxu0 0.0
      %521 = vmatprep.subr.mxu0 0.0
      %522 = vmatpush1.msra.mxu0 0.0
      %523 = vmatprep.subr.mxu0 0.0
      %524 = vmatpush1.msra.mxu0 0.0
      %525 = vmatprep.subr.mxu0 0.0
      %526 = vmatpush1.msra.mxu0 0.0
      %527 = vmatprep.subr.mxu0 0.0
      %528 = vmatpush1.msra.mxu0 0.0
      %529 = vmatprep.subr.mxu0 0.0
      %530 = vmatpush1.msra.mxu0 0.0
      %531 = vmatprep.subr.mxu0 0.0
      %532 = vmatpush1.msra.mxu0 0.0
      %533 = vmatprep.subr.mxu0 0.0
      %534 = vmatpush1.msra.mxu0 0.0
      %535 = vmatprep.mubr.f32.mxu0 0.0
      %v536 = vand.u32 %v155, 4294901760
      %v537 = vsub.f32 %v155, %v536
      %v538 = vand.u32 %v537, 4294901760
      %539 = vmatmul.mubr.f32.gmra.mrb[0].mxu0 %v538
      %v540 = vpop.f32.mrb[0].mxu0
      %v541 = vadd.f32 %v445, %v540
      %v542 = vpop.f32.mrb[0].mxu0
      %543 = vmatprep.mubr.f32.mxu0 0.0
      %v544 = vand.u32 %v158, 4294901760
      %v545 = vsub.f32 %v158, %v544
      %v546 = vand.u32 %v545, 4294901760
      %547 = vmatmul.mubr.f32.gmra.mrb[0].mxu0 %v546
      %v548 = vpop.f32.mrb[0].mxu0
      %v549 = vadd.f32 %v452, %v548
      %v550 = vpop.f32.mrb[0].mxu0
      %551 = vmatprep.mubr.f32.mxu0 0.0
      %v552 = vand.u32 %v161, 4294901760
      %v553 = vsub.f32 %v161, %v552
      %v554 = vand.u32 %v553, 4294901760
      %555 = vmatmul.mubr.f32.gmra.mrb[0].mxu0 %v554
      %v556 = vpop.f32.mrb[0].mxu0
      %v557 = vadd.f32 %v459, %v556
      %v558 = vpop.f32.mrb[0].mxu0
      %559 = vmatprep.mubr.f32.mxu0 0.0
      %v560 = vand.u32 %v164, 4294901760
      %v561 = vsub.f32 %v164, %v560
      %v562 = vand.u32 %v561, 4294901760
      %563 = vmatmul.mubr.f32.gmra.mrb[0].mxu0 %v562
      %v564 = vpop.f32.mrb[0].mxu0
      %v565 = vadd.f32 %v466, %v564
      %v566 = vpop.f32.mrb[0].mxu0
      %567 = vdwg.mxu0
      %568 = vmatprep.subr.mxu0 0.0
      %v569 = vand.u32 %v151, 4294901760
      %v570 = vsub.f32 %v151, %v569
      %v571 = vand.u32 %v570, 4294901760
      %572 = vmatpush1.msra.mxu0 %v571
      %573 = vmatprep.subr.mxu0 0.0
      %v574 = vand.u32 %v152, 4294901760
      %v575 = vsub.f32 %v152, %v574
      %v576 = vand.u32 %v575, 4294901760
      %577 = vmatpush1.msra.mxu0 %v576
      %578 = vmatprep.subr.mxu0 0.0
      %579 = vmatpush1.msra.mxu0 0.0
      %580 = vmatprep.subr.mxu0 0.0
      %581 = vmatpush1.msra.mxu0 0.0
      %582 = vmatprep.subr.mxu0 0.0
      %583 = vmatpush1.msra.mxu0 0.0
      %584 = vmatprep.subr.mxu0 0.0
      %585 = vmatpush1.msra.mxu0 0.0
      %586 = vmatprep.subr.mxu0 0.0
      %587 = vmatpush1.msra.mxu0 0.0
      %588 = vmatprep.subr.mxu0 0.0
      %589 = vmatpush1.msra.mxu0 0.0
      %590 = vmatprep.subr.mxu0 0.0
      %591 = vmatpush1.msra.mxu0 0.0
      %592 = vmatprep.subr.mxu0 0.0
      %593 = vmatpush1.msra.mxu0 0.0
      %594 = vmatprep.subr.mxu0 0.0
      %595 = vmatpush1.msra.mxu0 0.0
      %596 = vmatprep.subr.mxu0 0.0
      %597 = vmatpush1.msra.mxu0 0.0
      %598 = vmatprep.subr.mxu0 0.0
      %599 = vmatpush1.msra.mxu0 0.0
      %600 = vmatprep.subr.mxu0 0.0
      %601 = vmatpush1.msra.mxu0 0.0
      %602 = vmatprep.subr.mxu0 0.0
      %603 = vmatpush1.msra.mxu0 0.0
      %604 = vmatprep.subr.mxu0 0.0
      %605 = vmatpush1.msra.mxu0 0.0
      %606 = vmatprep.subr.mxu0 0.0
      %607 = vmatpush1.msra.mxu0 0.0
      %608 = vmatprep.subr.mxu0 0.0
      %609 = vmatpush1.msra.mxu0 0.0
      %610 = vmatprep.subr.mxu0 0.0
      %611 = vmatpush1.msra.mxu0 0.0
      %612 = vmatprep.subr.mxu0 0.0
      %613 = vmatpush1.msra.mxu0 0.0
      %614 = vmatprep.subr.mxu0 0.0
      %615 = vmatpush1.msra.mxu0 0.0
      %616 = vmatprep.subr.mxu0 0.0
      %617 = vmatpush1.msra.mxu0 0.0
      %618 = vmatprep.subr.mxu0 0.0
      %619 = vmatpush1.msra.mxu0 0.0
      %620 = vmatprep.subr.mxu0 0.0
      %621 = vmatpush1.msra.mxu0 0.0
      %622 = vmatprep.subr.mxu0 0.0
      %623 = vmatpush1.msra.mxu0 0.0
      %624 = vmatprep.subr.mxu0 0.0
      %625 = vmatpush1.msra.mxu0 0.0
      %626 = vmatprep.subr.mxu0 0.0
      %627 = vmatpush1.msra.mxu0 0.0
      %628 = vmatprep.subr.mxu0 0.0
      %629 = vmatpush1.msra.mxu0 0.0
      %630 = vmatprep.subr.mxu0 0.0
      %631 = vmatpush1.msra.mxu0 0.0
      %632 = vmatprep.subr.mxu0 0.0
      %633 = vmatpush1.msra.mxu0 0.0
      %634 = vmatprep.subr.mxu0 0.0
      %635 = vmatpush1.msra.mxu0 0.0
      %636 = vmatprep.subr.mxu0 0.0
      %637 = vmatpush1.msra.mxu0 0.0
      %638 = vmatprep.mubr.f32.mxu0 0.0
      %v639 = vand.u32 %v155, 4294901760
      %640 = vmatmul.mubr.f32.gmra.mrb[0].mxu0 %v639
      %v641 = vpop.f32.mrb[0].mxu0
      %v642 = vadd.f32 %v541, %v641
      %v643 = vpop.f32.mrb[0].mxu0
      %644 = vmatprep.mubr.f32.mxu0 0.0
      %v645 = vand.u32 %v158, 4294901760
      %646 = vmatmul.mubr.f32.gmra.mrb[0].mxu0 %v645
      %v647 = vpop.f32.mrb[0].mxu0
      %v648 = vadd.f32 %v549, %v647
      %v649 = vpop.f32.mrb[0].mxu0
      %650 = vmatprep.mubr.f32.mxu0 0.0
      %v651 = vand.u32 %v161, 4294901760
      %652 = vmatmul.mubr.f32.gmra.mrb[0].mxu0 %v651
      %v653 = vpop.f32.mrb[0].mxu0
      %v654 = vadd.f32 %v557, %v653
      %v655 = vpop.f32.mrb[0].mxu0
      %656 = vmatprep.mubr.f32.mxu0 0.0
      %v657 = vand.u32 %v164, 4294901760
      %658 = vmatmul.mubr.f32.gmra.mrb[0].mxu0 %v657
      %v659 = vpop.f32.mrb[0].mxu0
      %v660 = vadd.f32 %v565, %v659
      %v661 = vpop.f32.mrb[0].mxu0
      %662 = vdwg.mxu0
      %663 = vmatprep.subr.mxu0 0.0
      %v664 = vand.u32 %v151, 4294901760
      %665 = vmatpush1.msra.mxu0 %v664
      %666 = vmatprep.subr.mxu0 0.0
      %v667 = vand.u32 %v152, 4294901760
      %668 = vmatpush1.msra.mxu0 %v667
      %669 = vmatprep.subr.mxu0 0.0
      %670 = vmatpush1.msra.mxu0 0.0
      %671 = vmatprep.subr.mxu0 0.0
      %672 = vmatpush1.msra.mxu0 0.0
      %673 = vmatprep.subr.mxu0 0.0
      %674 = vmatpush1.msra.mxu0 0.0
      %675 = vmatprep.subr.mxu0 0.0
      %676 = vmatpush1.msra.mxu0 0.0
      %677 = vmatprep.subr.mxu0 0.0
      %678 = vmatpush1.msra.mxu0 0.0
      %679 = vmatprep.subr.mxu0 0.0
      %680 = vmatpush1.msra.mxu0 0.0
      %681 = vmatprep.subr.mxu0 0.0
      %682 = vmatpush1.msra.mxu0 0.0
      %683 = vmatprep.subr.mxu0 0.0
      %684 = vmatpush1.msra.mxu0 0.0
      %685 = vmatprep.subr.mxu0 0.0
      %686 = vmatpush1.msra.mxu0 0.0
      %687 = vmatprep.subr.mxu0 0.0
      %688 = vmatpush1.msra.mxu0 0.0
      %689 = vmatprep.subr.mxu0 0.0
      %690 = vmatpush1.msra.mxu0 0.0
      %691 = vmatprep.subr.mxu0 0.0
      %692 = vmatpush1.msra.mxu0 0.0
      %693 = vmatprep.subr.mxu0 0.0
      %694 = vmatpush1.msra.mxu0 0.0
      %695 = vmatprep.subr.mxu0 0.0
      %696 = vmatpush1.msra.mxu0 0.0
      %697 = vmatprep.subr.mxu0 0.0
      %698 = vmatpush1.msra.mxu0 0.0
      %699 = vmatprep.subr.mxu0 0.0
      %700 = vmatpush1.msra.mxu0 0.0
      %701 = vmatprep.subr.mxu0 0.0
      %702 = vmatpush1.msra.mxu0 0.0
      %703 = vmatprep.subr.mxu0 0.0
      %704 = vmatpush1.msra.mxu0 0.0
      %705 = vmatprep.subr.mxu0 0.0
      %706 = vmatpush1.msra.mxu0 0.0
      %707 = vmatprep.subr.mxu0 0.0
      %708 = vmatpush1.msra.mxu0 0.0
      %709 = vmatprep.subr.mxu0 0.0
      %710 = vmatpush1.msra.mxu0 0.0
      %711 = vmatprep.subr.mxu0 0.0
      %712 = vmatpush1.msra.mxu0 0.0
      %713 = vmatprep.subr.mxu0 0.0
      %714 = vmatpush1.msra.mxu0 0.0
      %715 = vmatprep.subr.mxu0 0.0
      %716 = vmatpush1.msra.mxu0 0.0
      %717 = vmatprep.subr.mxu0 0.0
      %718 = vmatpush1.msra.mxu0 0.0
      %719 = vmatprep.subr.mxu0 0.0
      %720 = vmatpush1.msra.mxu0 0.0
      %721 = vmatprep.subr.mxu0 0.0
      %722 = vmatpush1.msra.mxu0 0.0
      %723 = vmatprep.subr.mxu0 0.0
      %724 = vmatpush1.msra.mxu0 0.0
      %725 = vmatprep.subr.mxu0 0.0
      %726 = vmatpush1.msra.mxu0 0.0
      %727 = vmatprep.subr.mxu0 0.0
      %728 = vmatpush1.msra.mxu0 0.0
      %729 = vmatprep.mubr.f32.mxu0 0.0
      %v730 = vand.u32 %v155, 4294901760
      %731 = vmatmul.mubr.f32.gmra.mrb[0].mxu0 %v730
      %v732 = vpop.f32.mrb[0].mxu0
      %v733 = vadd.f32 %v642, %v732
      %v734 = vpop.f32.mrb[0].mxu0
      %735 = vmatprep.mubr.f32.mxu0 0.0
      %v736 = vand.u32 %v158, 4294901760
      %737 = vmatmul.mubr.f32.gmra.mrb[0].mxu0 %v736
      %v738 = vpop.f32.mrb[0].mxu0
      %v739 = vadd.f32 %v648, %v738
      %v740 = vpop.f32.mrb[0].mxu0
      %741 = vmatprep.mubr.f32.mxu0 0.0
      %v742 = vand.u32 %v161, 4294901760
      %743 = vmatmul.mubr.f32.gmra.mrb[0].mxu0 %v742
      %v744 = vpop.f32.mrb[0].mxu0
      %v745 = vadd.f32 %v654, %v744
      %v746 = vpop.f32.mrb[0].mxu0
      %747 = vmatprep.mubr.f32.mxu0 0.0
      %v748 = vand.u32 %v164, 4294901760
      %749 = vmatmul.mubr.f32.gmra.mrb[0].mxu0 %v748
      %v750 = vpop.f32.mrb[0].mxu0
      %v751 = vadd.f32 %v660, %v750
      %v752 = vpop.f32.mrb[0].mxu0
      %753 = vdwg.mxu0
      %vm754 = vcmask 523264
      %755 = vst.msk [vmem:[%s145] sm:$0xff] %vm754, %v733
      %756 = vst.msk [vmem:[%s145 + $0x8] sm:$0xff] %vm754, %v739
      %757 = vst.msk [vmem:[%s145 + $0x10] sm:$0xff] %vm754, %v745
      %758 = vst.msk [vmem:[%s145 + $0x18] sm:$0xff] %vm754, %v751
      %s759 = smul.u32 4, %s13
      %p760 = scmp.lt.s32.totalorder %s759, 15
      %s761 = scalar_select %p760, %s759, 15
      %s762 = smul.addr %s761, 8
      %s763 = scalar_lea.vmem %s2, %s762
      // Predicated region
      $region29: #{tpu_custom_call.1} parent=27 // pred_check
        %p764 = pneg %p78
      $region30: #{tpu_custom_call.1} parent=27 // pred_check_branch
        %766 = sbr.rel (%p764) target = $region32
      $region31: #{tpu_custom_call.1} parent=27 // pred_region
        %s767 = smul.u32 4, %s13
      $region32: #{tpu_custom_call.1} parent=27 // pred_fallthru
        _
    $region28: #{tpu_custom_call.1} parent=5 // pred_fallthru
      _
    %p768 = scmp.le.s32.totalorder 2, %s8
    // Predicated region
    $region33: #{tpu_custom_call.1} parent=5 // pred_check
      %p769 = pneg %p768
    $region34: #{tpu_custom_call.1} parent=5 // pred_check_branch
      %771 = sbr.rel (%p769) target = $region36
    $region35: #{tpu_custom_call.1} parent=5 // pred_region
      %s772 = ssub.s32 %s8, 2
      // Predicated region
      $region37: #{tpu_custom_call.1} parent=35 // pred_check
        %p773 = pneg %p84
      $region38: #{tpu_custom_call.1} parent=35 // pred_check_branch
        %775 = sbr.rel (%p773) target = $region40
      $region39: #{tpu_custom_call.1} parent=35 // pred_region
        %s776 = smul.u32 4, %s14
        %p777 = scmp.lt.s32.totalorder %s776, 15
        %s778 = scalar_select %p777, %s776, 15
        %s779 = smul.addr %s778, 8
        %s780 = scalar_lea.vmem %s2, %s779
      $region40: #{tpu_custom_call.1} parent=35 // pred_fallthru
        _
    $region36: #{tpu_custom_call.1} parent=5 // pred_fallthru
      _
  $region6: #{tpu_custom_call.1} parent=0 // loop_footer
    %s12 = sadd.s32 1, %s8
  $region7: #{tpu_custom_call.1} parent=0 // loop_footer_branch
    %7 = sbr.rel target = $region3
  $region8: #{tpu_custom_call.1} parent=0 // loop_exit
    _

</llo_original>
